<compile_context>
chip_gen: v6e
topology: v6e:2x2x1
jax: 0.10.0
libtpu: 0.0.40
codegen_flags: <defaults>
</compile_context>

<pallas_src>
import functools

import jax
import jax.numpy as jnp
from jax import lax
from jax.experimental import pallas as pl
from jax.experimental.pallas import tpu as pltpu


def _round_up(x: int, m: int) -> int:
    return (x + m - 1) // m * m


def _linear_softpool_kernel(td_ref, out_ref, num_ref, den_ref, *,
                            chunk, n_chunks, unroll):
    # td_ref : (tb, tt, tc) input tile in VMEM, tt == chunk * n_chunks
    # out_ref: (tb, tc)     f32 output tile, resident across the T grid axis
    # num_ref/den_ref: (tb, tc) f32 accumulators (VMEM scratch)
    k = pl.program_id(2)
    tb, _, tc = td_ref.shape

    @pl.when(k == 0)
    def _init():
        num_ref[...] = jnp.zeros_like(num_ref)
        den_ref[...] = jnp.zeros_like(den_ref)

    # Chunked reduction over the T tile: keeps the f32 cast and x*x
    # temporaries at (tb, chunk, tc) instead of the full (tb, tt, tc) tile.
    def body(c, carry):
        num_p, den_p = carry
        start = pl.multiple_of(c * chunk, chunk)
        x = td_ref[:, pl.ds(start, chunk), :].astype(jnp.float32)
        num_p = num_p + jnp.sum(x * x, axis=1)   # sum over time (pooldim=1)
        den_p = den_p + jnp.sum(x, axis=1)
        return num_p, den_p

    zeros = jnp.zeros((tb, tc), jnp.float32)
    num_p, den_p = lax.fori_loop(0, n_chunks, body, (zeros, zeros),
                                 unroll=unroll)

    num_ref[...] += num_p
    den_ref[...] += den_p

    @pl.when(k == pl.num_programs(2) - 1)
    def _finalize():
        # Exact divide: once per output tile, negligible cost. Fully padded
        # B rows / C columns give 0/0 = NaN here; the wrapper slices them off,
        # so this is benign by construction (do not "fix" into a bug).
        out_ref[...] = num_ref[...] / den_ref[...]


def _linear_softpool_ref(time_decision):
    x = time_decision.astype(jnp.float32)
    return (jnp.sum(x * x, axis=1) / jnp.sum(x, axis=1)).astype(
        time_decision.dtype)


def _plan_tiles(B, T, C, itemsize, target_block_bytes, max_block_bytes):
    """Pick padded shapes + tile sizes. Returns (Bp, Tp, Cp, tb, tt, tc, chunk)."""
    # Sublane granularity for the (second-to-last) T dim: packed dtypes need
    # multiples of 16 (bf16) / 32 (8-bit).
    t_align = 8 * max(1, 4 // itemsize)

    Bp = _round_up(B, 8)
    Cp = _round_up(C, 128)
    Tp = _round_up(T, t_align)
    tb = 8

    # Prefer full-C (contiguous DMA) tiles; shrink the C tile only if even a
    # minimal-height block would blow the per-buffer budget.
    tc = Cp
    if tb * t_align * tc * itemsize > max_block_bytes:
        tc = max(128,
                 (max_block_bytes // (tb * t_align * itemsize)) // 128 * 128)
        Cp = _round_up(Cp, tc)

    # Megacore (v7x has 2 TensorCores sharing HBM): ensure the parallel (B, C)
    # grid has at least 2 tiles when it would otherwise collapse to 1x1.
    if Bp // tb == 1 and Cp // tc == 1 and Cp >= 256:
        tc = _round_up(Cp // 2, 128)
        Cp = 2 * tc

    # Pick tt so one input block is ~target_block_bytes (amortizes the fixed
    # per-grid-step overhead against the DMA), clamped to the (padded) T.
    tt = target_block_bytes // (tb * tc * itemsize)
    tt = max(t_align, (tt // t_align) * t_align)
    tt = min(tt, Tp)
    Tp = _round_up(Tp, tt)

    # In-kernel reduction chunk: largest of these that divides tt and respects
    # the packed sublane granularity. (tt is a multiple of t_align, so t_align
    # always qualifies.)
    chunk = t_align
    for cand in (128, 64, 32, 16, 8):
        if cand >= t_align and tt % cand == 0:
            chunk = cand
            break

    return Bp, Tp, Cp, tb, tt, tc, chunk


@functools.partial(
    jax.jit,
    static_argnames=("target_block_bytes", "max_block_bytes",
                     "vmem_limit_bytes", "force_pallas", "min_pallas_elems"),
)
def linear_soft_pool(
    logits,
    time_decision,
    *,
    target_block_bytes: int = 8 * 1024 * 1024,   # ~8 MiB per input buffer
    max_block_bytes: int = 16 * 1024 * 1024,     # hard cap per input buffer
    vmem_limit_bytes: int = 48 * 1024 * 1024,    # safe on v5e/v6e/v7x
    force_pallas: bool = False,
    min_pallas_elems: int = 1 << 20,   # below ~4 MiB of f32, plain XLA wins
):
    """LinearSoftPool forward. `logits` is unused (matches the PyTorch module)."""
    del logits  # not used in the reference forward pass
    B, T, C = time_decision.shape
    in_dtype = time_decision.dtype

    # Tiny problems: pallas_call launch + per-step overhead dominates.
    if not force_pallas and B * T * C < min_pallas_elems:
        return _linear_softpool_ref(time_decision)

    itemsize = jnp.dtype(in_dtype).itemsize
    Bp, Tp, Cp, tb, tt, tc, chunk = _plan_tiles(
        B, T, C, itemsize, target_block_bytes, max_block_bytes)
    n_chunks = tt // chunk
    unroll = min(n_chunks, 8)

    x = time_decision
    if (Bp, Tp, Cp) != (B, T, C):
        # Zero padding is exact for both the sum and the sum of squares.
        # Fully padded rows/cols produce 0/0 = NaN and are sliced off below.
        x = jnp.pad(x, ((0, Bp - B), (0, Tp - T), (0, Cp - C)))

    grid = (Bp // tb, Cp // tc, Tp // tt)   # (parallel, parallel, reduction)

    kernel = functools.partial(_linear_softpool_kernel,
                               chunk=chunk, n_chunks=n_chunks, unroll=unroll)

    out = pl.pallas_call(
        kernel,
        out_shape=jax.ShapeDtypeStruct((Bp, Cp), jnp.float32),
        grid_spec=pltpu.PrefetchScalarGridSpec(
            num_scalar_prefetch=0,
            grid=grid,
            in_specs=[
                # array (Bp, Tp, Cp); block index = (b_tile, t_tile, c_tile)
                pl.BlockSpec((tb, tt, tc), lambda i, j, k: (i, k, j)),
            ],
            # Output tile depends only on (i, j) -> stays resident across k.
            out_specs=pl.BlockSpec((tb, tc), lambda i, j, k: (i, j)),
            scratch_shapes=[
                pltpu.VMEM((tb, tc), jnp.float32),   # sum of squares
                pltpu.VMEM((tb, tc), jnp.float32),   # sum
            ],
        ),
        compiler_params=pltpu.CompilerParams(
            dimension_semantics=("parallel", "parallel", "arbitrary"),
            vmem_limit_bytes=vmem_limit_bytes,
        ),
        cost_estimate=pl.CostEstimate(
            flops=3 * Bp * Tp * Cp,
            transcendentals=0,
            bytes_accessed=Bp * Tp * Cp * itemsize + Bp * Cp * 4,
        ),
    )(x)

    return out[:B, :C].astype(in_dtype)


if __name__ == "__main__":
    key = jax.random.PRNGKey(0)
    k1, k2, k3, k4 = jax.random.split(key, 4)

    # --- small (batch, time, class) shape matching the module's typical use ---
    B, T, C = 2, 8, 32
    logits = jax.random.normal(k1, (B, T, C), dtype=jnp.float32)
    td = jax.nn.sigmoid(jax.random.normal(k2, (B, T, C), dtype=jnp.float32))
    out = jax.block_until_ready(linear_soft_pool(logits, td, force_pallas=True))
    ref = jnp.sum(td ** 2, axis=1) / jnp.sum(td, axis=1)
    assert out.shape == (B, C)
    assert jnp.allclose(out, ref, atol=1e-5, rtol=1e-5)

    # --- padding + chunked T reduction + megacore C split ---
    B2, T2, C2 = 3, 600, 160
    td2 = jax.nn.sigmoid(jax.random.normal(k3, (B2, T2, C2), dtype=jnp.float32))
    out2 = jax.block_until_ready(linear_soft_pool(None, td2, force_pallas=True))
    ref2 = jnp.sum(td2 ** 2, axis=1) / jnp.sum(td2, axis=1)
    assert out2.shape == (B2, C2)
    assert jnp.allclose(out2, ref2, atol=1e-5, rtol=1e-5)

    # --- bf16 input: f32 accumulation/output in-kernel, cast in the wrapper ---
    B3, T3, C3 = 4, 96, 257
    td3 = jax.nn.sigmoid(
        jax.random.normal(k4, (B3, T3, C3), dtype=jnp.float32)
    ).astype(jnp.bfloat16)
    out3 = jax.block_until_ready(linear_soft_pool(None, td3, force_pallas=True))
    ref3 = _linear_softpool_ref(td3)
    assert out3.shape == (B3, C3) and out3.dtype == jnp.bfloat16
    assert jnp.allclose(out3.astype(jnp.float32), ref3.astype(jnp.float32),
                        atol=2e-2, rtol=2e-2)

    print("KERNEL_OK")
</pallas_src>

<mosaic_0001>
module attributes {stable_mosaic.version = 11 : i64} {
  func.func @_linear_softpool_kernel(%arg0: i32, %arg1: i32, %arg2: i32, %arg3: memref<8x8x128xf32, #tpu.memory_space<vmem>>, %arg4: memref<8x128xf32, #tpu.memory_space<vmem>>, %arg5: memref<8x128xf32, #tpu.memory_space<vmem>>, %arg6: memref<8x128xf32, #tpu.memory_space<vmem>>) attributes {dimension_semantics = [#tpu.dimension_semantics<parallel>, #tpu.dimension_semantics<parallel>, #tpu.dimension_semantics<arbitrary>], iteration_bounds = array<i64: 1, 1, 1>, scalar_prefetch = 0 : i64, scratch_operands = 2 : i64, tpu.core_type = #tpu.core_type<tc>, window_params = [{transform_indices = @transform_0, window_bounds = array<i64: 8, 8, 128>}, {transform_indices = @transform_1, window_bounds = array<i64: 8, 128>}]} {
    %c0_i32 = arith.constant 0 : i32
    %0 = arith.cmpi eq, %arg2, %c0_i32 : i32
    %1 = arith.extui %0 : i1 to i32
    %c0_i32_0 = arith.constant 0 : i32
    %2 = arith.cmpi ne, %1, %c0_i32_0 : i32
    scf.if %2 {
      %cst_15 = arith.constant 0.000000e+00 : f32
      %22 = vector.broadcast %cst_15 : f32 to vector<8x128xf32>
      %c0_16 = arith.constant 0 : index
      %c0_17 = arith.constant 0 : index
      %23 = vector.load %arg5[%c0_16, %c0_17] : memref<8x128xf32, #tpu.memory_space<vmem>>, vector<8x128xf32>
      tpu.vector_store %arg5[%c0_16, %c0_17], %22 {strides = array<i32>} : memref<8x128xf32, #tpu.memory_space<vmem>>, vector<8x128xf32>,
      %cst_18 = arith.constant 0.000000e+00 : f32
      %24 = vector.broadcast %cst_18 : f32 to vector<8x128xf32>
      %c0_19 = arith.constant 0 : index
      %c0_20 = arith.constant 0 : index
      %25 = vector.load %arg6[%c0_19, %c0_20] : memref<8x128xf32, #tpu.memory_space<vmem>>, vector<8x128xf32>
      tpu.vector_store %arg6[%c0_19, %c0_20], %24 {strides = array<i32>} : memref<8x128xf32, #tpu.memory_space<vmem>>, vector<8x128xf32>,
    } else {
    }
    %cst = arith.constant 0.000000e+00 : f32
    %3 = vector.broadcast %cst : f32 to vector<8x128xf32>
    %c0_i32_1 = arith.constant 0 : i32
    %c8_i32 = arith.constant 8 : i32
    %4 = arith.muli %c0_i32_1, %c8_i32 : i32
    %5 = tpu.assume_multiple %4, 8 : i32
    %c0 = arith.constant 0 : index
    %6 = arith.index_cast %5 : i32 to index
    %c0_2 = arith.constant 0 : index
    %7 = vector.load %arg3[%c0, %6, %c0_2] : memref<8x8x128xf32, #tpu.memory_space<vmem>>, vector<8x8x128xf32>
    %8 = arith.mulf %7, %7 : vector<8x8x128xf32>
    %cst_3 = arith.constant dense<0.000000e+00> : vector<8x128xf32>
    %9 = vector.multi_reduction <add>, %8, %cst_3 [1] : vector<8x8x128xf32> to vector<8x128xf32>
    %10 = arith.addf %3, %9 : vector<8x128xf32>
    %cst_4 = arith.constant dense<0.000000e+00> : vector<8x128xf32>
    %11 = vector.multi_reduction <add>, %7, %cst_4 [1] : vector<8x8x128xf32> to vector<8x128xf32>
    %12 = arith.addf %3, %11 : vector<8x128xf32>
    %c1_i32 = arith.constant 1 : i32
    %c0_5 = arith.constant 0 : index
    %c0_6 = arith.constant 0 : index
    %13 = vector.load %arg5[%c0_5, %c0_6] : memref<8x128xf32, #tpu.memory_space<vmem>>, vector<8x128xf32>
    %14 = arith.addf %13, %10 : vector<8x128xf32>
    %c0_7 = arith.constant 0 : index
    %c0_8 = arith.constant 0 : index
    %15 = vector.load %arg5[%c0_7, %c0_8] : memref<8x128xf32, #tpu.memory_space<vmem>>, vector<8x128xf32>
    tpu.vector_store %arg5[%c0_7, %c0_8], %14 {strides = array<i32>} : memref<8x128xf32, #tpu.memory_space<vmem>>, vector<8x128xf32>,
    %c0_9 = arith.constant 0 : index
    %c0_10 = arith.constant 0 : index
    %16 = vector.load %arg6[%c0_9, %c0_10] : memref<8x128xf32, #tpu.memory_space<vmem>>, vector<8x128xf32>
    %17 = arith.addf %16, %12 : vector<8x128xf32>
    %c0_11 = arith.constant 0 : index
    %c0_12 = arith.constant 0 : index
    %18 = vector.load %arg6[%c0_11, %c0_12] : memref<8x128xf32, #tpu.memory_space<vmem>>, vector<8x128xf32>
    tpu.vector_store %arg6[%c0_11, %c0_12], %17 {strides = array<i32>} : memref<8x128xf32, #tpu.memory_space<vmem>>, vector<8x128xf32>,
    %c0_i32_13 = arith.constant 0 : i32
    %19 = arith.cmpi eq, %arg2, %c0_i32_13 : i32
    %20 = arith.extui %19 : i1 to i32
    %c0_i32_14 = arith.constant 0 : i32
    %21 = arith.cmpi ne, %20, %c0_i32_14 : i32
    scf.if %21 {
      %c0_15 = arith.constant 0 : index
      %c0_16 = arith.constant 0 : index
      %22 = vector.load %arg5[%c0_15, %c0_16] : memref<8x128xf32, #tpu.memory_space<vmem>>, vector<8x128xf32>
      %c0_17 = arith.constant 0 : index
      %c0_18 = arith.constant 0 : index
      %23 = vector.load %arg6[%c0_17, %c0_18] : memref<8x128xf32, #tpu.memory_space<vmem>>, vector<8x128xf32>
      %24 = arith.divf %22, %23 : vector<8x128xf32>
      %c0_19 = arith.constant 0 : index
      %c0_20 = arith.constant 0 : index
      %25 = vector.load %arg4[%c0_19, %c0_20] : memref<8x128xf32, #tpu.memory_space<vmem>>, vector<8x128xf32>
      tpu.vector_store %arg4[%c0_19, %c0_20], %24 {strides = array<i32>} : memref<8x128xf32, #tpu.memory_space<vmem>>, vector<8x128xf32>,
    } else {
    }
    return
  }
  func.func @transform_0(%arg0: i32, %arg1: i32, %arg2: i32) -> (i32, i32, i32) {
    %c0_i32 = arith.constant 0 : i32
    return %arg0, %arg2, %arg1 : i32, i32, i32
  }
  func.func @transform_1(%arg0: i32, %arg1: i32, %arg2: i32) -> (i32, i32) {
    %c0_i32 = arith.constant 0 : i32
    return %arg0, %arg1 : i32, i32
  }
}

</mosaic_0001>

<llo_original>
// kernel: linear_soft_pool.1
$region0: #{linear_soft_pool.1}
  #allocation0 [shape = 'u32[]', space=smem, size = 0x4, offset = 0x4, fixed_abs, tag = 'smem constant byte address 0x4 - core index']
  #allocation1 [shape = 'u32[144,128]{1,0:T(1,128)}', space=vmem, size = 0x12000, scoped, tag = 'internal scratch']
  #allocation2 [shape = 'f32[8,128]{1,0:T(8,128)}', space=vmem, size = 0x1000, scoped, tag = 'scratch operand']
  #allocation3 [shape = 'f32[8,128]{1,0:T(8,128)}', space=vmem, size = 0x1000, scoped, tag = 'scratch operand']
  %s0 = inlined_call_operand.vmem [shape: f32[8,8,128], index: 0, kind: input, shape index: {}]
  %s1 = inlined_call_operand.vmem [shape: f32[8,128], index: 1, kind: output, shape index: {}]
  %s2 = sld [smem:[#allocation0]]
  $region22: #{linear_soft_pool.1} parent=0
    _
  %s4 = ssub.s32 1, %s2
  %s5 = scalar_select 0, %s4, %s2
  // Predicated region
  $region2: #{linear_soft_pool.1} parent=0 // pred_check
    _
  $region3: #{linear_soft_pool.1} parent=0 // pred_check_branch
    %7 = sbr.rel (0) target = $region5
  $region4: #{linear_soft_pool.1} parent=0 // pred_region
    _
  $region5: #{linear_soft_pool.1} parent=0 // pred_fallthru
    _
  %p8 = scmp.eq.s32.totalorder 0, 0
  // Predicated region
  $region6: #{linear_soft_pool.1} parent=0 // pred_check
    %p9 = pneg %p8
  $region7: #{linear_soft_pool.1} parent=0 // pred_check_branch
    %11 = sbr.rel (%p9) target = $region9
  $region8: #{linear_soft_pool.1} parent=0 // pred_region
    %12 = vst [vmem:[#allocation2] sm:$0xff] 0.0
    %13 = vst [vmem:[#allocation3] sm:$0xff] 0.0
  $region9: #{linear_soft_pool.1} parent=0 // pred_fallthru
    _
  %v14 = vld [vmem:[%s0] sm:$0xff]
  %v15 = vld [vmem:[%s0 + $0x8] sm:$0xff]
  %v16 = vld [vmem:[%s0 + $0x10] sm:$0xff]
  %v17 = vld [vmem:[%s0 + $0x18] sm:$0xff]
  %v18 = vld [vmem:[%s0 + $0x20] sm:$0xff]
  %v19 = vld [vmem:[%s0 + $0x28] sm:$0xff]
  %v20 = vld [vmem:[%s0 + $0x30] sm:$0xff]
  %v21 = vld [vmem:[%s0 + $0x38] sm:$0xff]
  %v22 = vmul.f32 %v14, %v14
  %v23 = vmul.f32 %v15, %v15
  %v24 = vmul.f32 %v16, %v16
  %v25 = vmul.f32 %v17, %v17
  %v26 = vmul.f32 %v18, %v18
  %v27 = vmul.f32 %v19, %v19
  %v28 = vmul.f32 %v20, %v20
  %v29 = vmul.f32 %v21, %v21
  %v30 = vrot.slane %v22, 4
  %v31 = vadd.f32 %v22, %v30
  %v32 = vrot.slane %v31, 2
  %v33 = vadd.f32 %v31, %v32
  %v34 = vrot.slane %v33, 1
  %v35 = vadd.f32 %v33, %v34
  %v36 = vrot.slane %v23, 4
  %v37 = vadd.f32 %v23, %v36
  %v38 = vrot.slane %v37, 2
  %v39 = vadd.f32 %v37, %v38
  %v40 = vrot.slane %v39, 1
  %v41 = vadd.f32 %v39, %v40
  %v42 = vrot.slane %v24, 4
  %v43 = vadd.f32 %v24, %v42
  %v44 = vrot.slane %v43, 2
  %v45 = vadd.f32 %v43, %v44
  %v46 = vrot.slane %v45, 1
  %v47 = vadd.f32 %v45, %v46
  %v48 = vrot.slane %v25, 4
  %v49 = vadd.f32 %v25, %v48
  %v50 = vrot.slane %v49, 2
  %v51 = vadd.f32 %v49, %v50
  %v52 = vrot.slane %v51, 1
  %v53 = vadd.f32 %v51, %v52
  %v54 = vrot.slane %v26, 4
  %v55 = vadd.f32 %v26, %v54
  %v56 = vrot.slane %v55, 2
  %v57 = vadd.f32 %v55, %v56
  %v58 = vrot.slane %v57, 1
  %v59 = vadd.f32 %v57, %v58
  %v60 = vrot.slane %v27, 4
  %v61 = vadd.f32 %v27, %v60
  %v62 = vrot.slane %v61, 2
  %v63 = vadd.f32 %v61, %v62
  %v64 = vrot.slane %v63, 1
  %v65 = vadd.f32 %v63, %v64
  %v66 = vrot.slane %v28, 4
  %v67 = vadd.f32 %v28, %v66
  %v68 = vrot.slane %v67, 2
  %v69 = vadd.f32 %v67, %v68
  %v70 = vrot.slane %v69, 1
  %v71 = vadd.f32 %v69, %v70
  %v72 = vrot.slane %v29, 4
  %v73 = vadd.f32 %v29, %v72
  %v74 = vrot.slane %v73, 2
  %v75 = vadd.f32 %v73, %v74
  %v76 = vrot.slane %v75, 1
  %v77 = vadd.f32 %v75, %v76
  %v78 = vadd.f32 %v35, 0.0
  %v79 = vadd.f32 %v41, 0.0
  %v80 = vadd.f32 %v47, 0.0
  %v81 = vadd.f32 %v53, 0.0
  %v82 = vadd.f32 %v59, 0.0
  %v83 = vadd.f32 %v65, 0.0
  %v84 = vadd.f32 %v71, 0.0
  %v85 = vadd.f32 %v77, 0.0
  %v86 = vrot.slane %v14, 4
  %v87 = vadd.f32 %v14, %v86
  %v88 = vrot.slane %v87, 2
  %v89 = vadd.f32 %v87, %v88
  %v90 = vrot.slane %v89, 1
  %v91 = vadd.f32 %v89, %v90
  %v92 = vrot.slane %v15, 4
  %v93 = vadd.f32 %v15, %v92
  %v94 = vrot.slane %v93, 2
  %v95 = vadd.f32 %v93, %v94
  %v96 = vrot.slane %v95, 1
  %v97 = vadd.f32 %v95, %v96
  %v98 = vrot.slane %v16, 4
  %v99 = vadd.f32 %v16, %v98
  %v100 = vrot.slane %v99, 2
  %v101 = vadd.f32 %v99, %v100
  %v102 = vrot.slane %v101, 1
  %v103 = vadd.f32 %v101, %v102
  %v104 = vrot.slane %v17, 4
  %v105 = vadd.f32 %v17, %v104
  %v106 = vrot.slane %v105, 2
  %v107 = vadd.f32 %v105, %v106
  %v108 = vrot.slane %v107, 1
  %v109 = vadd.f32 %v107, %v108
  %v110 = vrot.slane %v18, 4
  %v111 = vadd.f32 %v18, %v110
  %v112 = vrot.slane %v111, 2
  %v113 = vadd.f32 %v111, %v112
  %v114 = vrot.slane %v113, 1
  %v115 = vadd.f32 %v113, %v114
  %v116 = vrot.slane %v19, 4
  %v117 = vadd.f32 %v19, %v116
  %v118 = vrot.slane %v117, 2
  %v119 = vadd.f32 %v117, %v118
  %v120 = vrot.slane %v119, 1
  %v121 = vadd.f32 %v119, %v120
  %v122 = vrot.slane %v20, 4
  %v123 = vadd.f32 %v20, %v122
  %v124 = vrot.slane %v123, 2
  %v125 = vadd.f32 %v123, %v124
  %v126 = vrot.slane %v125, 1
  %v127 = vadd.f32 %v125, %v126
  %v128 = vrot.slane %v21, 4
  %v129 = vadd.f32 %v21, %v128
  %v130 = vrot.slane %v129, 2
  %v131 = vadd.f32 %v129, %v130
  %v132 = vrot.slane %v131, 1
  %v133 = vadd.f32 %v131, %v132
  %v134 = vadd.f32 %v91, 0.0
  %v135 = vadd.f32 %v97, 0.0
  %v136 = vadd.f32 %v103, 0.0
  %v137 = vadd.f32 %v109, 0.0
  %v138 = vadd.f32 %v115, 0.0
  %v139 = vadd.f32 %v121, 0.0
  %v140 = vadd.f32 %v127, 0.0
  %v141 = vadd.f32 %v133, 0.0
  %v142 = vld [vmem:[#allocation2] sm:$0xff]
  %vm151 = vcmask 1041409
  %v152 = vsel %vm151, %v79, %v78
  %vm153 = vcmask 1042434
  %v154 = vsel %vm153, %v80, %v152
  %vm155 = vcmask 1043459
  %v156 = vsel %vm155, %v81, %v154
  %vm157 = vcmask 1044484
  %v158 = vsel %vm157, %v82, %v156
  %vm159 = vcmask 1045509
  %v160 = vsel %vm159, %v83, %v158
  %vm161 = vcmask 1046534
  %v162 = vsel %vm161, %v84, %v160
  %vm163 = vcmask 1047559
  %v164 = vsel %vm163, %v85, %v162
  %v166 = vadd.f32 %v142, %v164
  %167 = vst [vmem:[#allocation2] sm:$0xff] %v166
  %v168 = vld [vmem:[#allocation3] sm:$0xff]
  %v177 = vsel %vm151, %v135, %v134
  %v178 = vsel %vm153, %v136, %v177
  %v179 = vsel %vm155, %v137, %v178
  %v180 = vsel %vm157, %v138, %v179
  %v181 = vsel %vm159, %v139, %v180
  %v182 = vsel %vm161, %v140, %v181
  %v183 = vsel %vm163, %v141, %v182
  %v185 = vadd.f32 %v168, %v183
  %186 = vst [vmem:[#allocation3] sm:$0xff] %v185
  // Predicated region
  $region10: #{linear_soft_pool.1} parent=0 // pred_check
    %p187 = pneg %p8
  $region11: #{linear_soft_pool.1} parent=0 // pred_check_branch
    %189 = sbr.rel (%p187) target = $region13
  $region12: #{linear_soft_pool.1} parent=0 // pred_region
    %v190 = vld [vmem:[#allocation2] sm:$0xff]
    %v191 = vld [vmem:[#allocation3] sm:$0xff]
    %v192 = vrcp.pop %v191
    %v193 = vmul.f32 %v190, %v192
    %194 = vst [vmem:[%s1] sm:$0xff] %v193
  $region13: #{linear_soft_pool.1} parent=0 // pred_fallthru
    _
  // Predicated region
  $region14: #{linear_soft_pool.1} parent=0 // pred_check
    _
  $region15: #{linear_soft_pool.1} parent=0 // pred_check_branch
    %196 = sbr.rel (0) target = $region17
  $region16: #{linear_soft_pool.1} parent=0 // pred_region
    _
  $region17: #{linear_soft_pool.1} parent=0 // pred_fallthru
    _
  // Predicated region
  $region18: #{linear_soft_pool.1} parent=0 // pred_check
    _
  $region19: #{linear_soft_pool.1} parent=0 // pred_check_branch
    %198 = sbr.rel (0) target = $region21
  $region20: #{linear_soft_pool.1} parent=0 // pred_region
    _
  $region21: #{linear_soft_pool.1} parent=0 // pred_fallthru
    _

</llo_original>
